<compile_context>
chip_gen: v5e
topology: v5e:2x2
jax: 0.10.0
libtpu: 0.0.40
codegen_flags: <defaults>
</compile_context>

<pallas_src>
import functools

import jax
import jax.numpy as jnp
from jax.experimental import pallas as pl


def _full_spec(shape):
    """Whole-array block (no grid)."""
    return pl.BlockSpec(shape, lambda: (0,) * len(shape))


# ---------------------------------------------------------------------------
# Kernels
# ---------------------------------------------------------------------------
def _upconv_kernel(x_ref, w_ref, b_ref, o_ref):
    # ConvTranspose2d(k=2, s=2) as one matmul over channels.
    #   x: (C_in, L)   with L = N*H1*W1 on the lane axis
    #   w: (C_half*4, C_in)   rows indexed by (c_out, kh, kw)
    #   b: (C_half*4, 1)
    o_ref[...] = (
        jnp.dot(w_ref[...], x_ref[...], preferred_element_type=jnp.float32)
        + b_ref[...]
    )


def _conv_bn_relu_kernel(x_ref, w_ref, b_ref, g_ref, bt_ref, o_ref, *, eps, inv_n):
    # Fused Conv2d(3x3, pad=1) + BatchNorm2d (batch stats) + ReLU.
    #   x: (C_in*9, L) im2col patches, L = N*H*W on the lane axis
    #   w: (C_out, C_in*9); b/g/bt: (C_out, 1)
    z = jnp.dot(w_ref[...], x_ref[...], preferred_element_type=jnp.float32)
    z = z + b_ref[...]
    # Batch statistics over (N, H, W) == lane axis (XLU reduction).
    mean = jnp.sum(z, axis=-1, keepdims=True) * inv_n
    d = z - mean
    var = jnp.sum(d * d, axis=-1, keepdims=True) * inv_n
    y = g_ref[...] * d * jax.lax.rsqrt(var + eps) + bt_ref[...]
    o_ref[...] = jnp.maximum(y, 0.0)  # ReLU


# ---------------------------------------------------------------------------
# Wrappers
# ---------------------------------------------------------------------------
def _conv_transpose_2x2(x1, weight, bias):
    """ConvTranspose2d(C_in, C_half, kernel=2, stride=2) via one Pallas matmul."""
    N, C_in, H, W = x1.shape
    C_half = weight.shape[1]
    L = N * H * W

    x_mat = x1.transpose(1, 0, 2, 3).reshape(C_in, L)   # lanes = N*H*W
    w_mat = weight.reshape(C_in, C_half * 4).T           # (C_half*4, C_in)
    b_mat = jnp.repeat(bias, 4).reshape(C_half * 4, 1)   # bias per (co, kh, kw)

    y = pl.pallas_call(
        _upconv_kernel,
        out_shape=jax.ShapeDtypeStruct((C_half * 4, L), jnp.float32),
        in_specs=[_full_spec(x_mat.shape), _full_spec(w_mat.shape),
                  _full_spec(b_mat.shape)],
        out_specs=_full_spec((C_half * 4, L)),
    )(x_mat, w_mat, b_mat)

    # y[co*4 + kh*2 + kw, n*H*W + h*W + w]  ->  out[n, co, 2h+kh, 2w+kw]
    y = y.reshape(C_half, 2, 2, N, H, W).transpose(3, 0, 4, 1, 5, 2)
    return y.reshape(N, C_half, 2 * H, 2 * W)


def _im2col_3x3(x):
    """(N, C, H, W) -> (C*9, N*H*W) patches for a 3x3 / pad=1 convolution."""
    N, C, H, W = x.shape
    xp = jnp.pad(x, ((0, 0), (0, 0), (1, 1), (1, 1)))
    taps = [xp[:, :, dy:dy + H, dx:dx + W] for dy in range(3) for dx in range(3)]
    patches = jnp.stack(taps, axis=0)            # (9, N, C, H, W)
    patches = patches.transpose(2, 0, 1, 3, 4)   # (C, 9, N, H, W)
    return patches.reshape(C * 9, N * H * W)


def _conv3x3_bn_relu(x, weight, bias, gamma, beta, eps=1e-5):
    """Fused Conv2d(3x3, pad=1) + BatchNorm2d(training stats) + ReLU."""
    N, C, H, W = x.shape
    C_out = weight.shape[0]
    L = N * H * W

    patches = _im2col_3x3(x)                      # (C*9, L)
    w2d = weight.reshape(C_out, C * 9)

    kernel = functools.partial(_conv_bn_relu_kernel,
                               eps=float(eps), inv_n=1.0 / float(L))
    out2d = pl.pallas_call(
        kernel,
        out_shape=jax.ShapeDtypeStruct((C_out, L), jnp.float32),
        in_specs=[_full_spec(patches.shape), _full_spec(w2d.shape),
                  _full_spec((C_out, 1)), _full_spec((C_out, 1)),
                  _full_spec((C_out, 1))],
        out_specs=_full_spec((C_out, L)),
    )(patches, w2d, bias.reshape(C_out, 1), gamma.reshape(C_out, 1),
      beta.reshape(C_out, 1))

    return out2d.reshape(C_out, N, H, W).transpose(1, 0, 2, 3)


def up_forward(x1, x2, params):
    """Forward pass of the PyTorch `Up` module (bilinear=False path)."""
    # 1) Transposed-conv upsample of x1.
    x1_up = _conv_transpose_2x2(x1, params["up_w"], params["up_b"])

    # 2) Center-pad x1 to x2's spatial size (skipped statically when no-op).
    diff_y = x2.shape[2] - x1_up.shape[2]
    diff_x = x2.shape[3] - x1_up.shape[3]
    if diff_y or diff_x:
        x1_up = jnp.pad(
            x1_up,
            ((0, 0), (0, 0),
             (diff_y // 2, diff_y - diff_y // 2),
             (diff_x // 2, diff_x - diff_x // 2)),
        )

    # 3) Skip connection concat along channels.
    x = jnp.concatenate([x2, x1_up], axis=1)

    # 4) DoubleConv: two fused conv+BN+ReLU kernels.
    x = _conv3x3_bn_relu(x, params["conv1_w"], params["conv1_b"],
                         params["bn1_g"], params["bn1_b"])
    x = _conv3x3_bn_relu(x, params["conv2_w"], params["conv2_b"],
                         params["bn2_g"], params["bn2_b"])
    return x


# ---------------------------------------------------------------------------
# Demo
# ---------------------------------------------------------------------------
if __name__ == "__main__":
    in_ch, out_ch = 4, 4
    c_half = in_ch // 2
    N, H1, W1 = 2, 8, 8   # x1: low-res decoder features; x2: skip at 2x res

    key = jax.random.PRNGKey(0)
    keys = jax.random.split(key, 8)

    x1 = jax.random.normal(keys[0], (N, in_ch, H1, W1), dtype=jnp.float32)
    x2 = jax.random.normal(keys[1], (N, c_half, 2 * H1, 2 * W1),
                           dtype=jnp.float32)

    def _uniform(k, shape, fan_in):
        bound = 1.0 / (fan_in ** 0.5)
        return jax.random.uniform(k, shape, jnp.float32, -bound, bound)

    params = {
        # ConvTranspose2d(in_ch, in_ch // 2, 2, stride=2)
        "up_w": _uniform(keys[2], (in_ch, c_half, 2, 2), in_ch * 4),
        "up_b": _uniform(keys[3], (c_half,), in_ch * 4),
        # DoubleConv(in_ch, out_ch): conv1 + bn1, conv2 + bn2
        "conv1_w": _uniform(keys[4], (out_ch, in_ch, 3, 3), in_ch * 9),
        "conv1_b": _uniform(keys[5], (out_ch,), in_ch * 9),
        "bn1_g": jnp.ones((out_ch,), jnp.float32),
        "bn1_b": jnp.zeros((out_ch,), jnp.float32),
        "conv2_w": _uniform(keys[6], (out_ch, out_ch, 3, 3), out_ch * 9),
        "conv2_b": _uniform(keys[7], (out_ch,), out_ch * 9),
        "bn2_g": jnp.ones((out_ch,), jnp.float32),
        "bn2_b": jnp.zeros((out_ch,), jnp.float32),
    }

    out = jax.jit(up_forward)(x1, x2, params)
    jax.block_until_ready(out)
    assert out.shape == (N, out_ch, 2 * H1, 2 * W1), out.shape
    print("KERNEL_OK")
</pallas_src>

<mosaic_0001>
module attributes {stable_mosaic.version = 11 : i64} {
  func.func @_upconv_kernel(%arg0: memref<4x128xf32, #tpu.memory_space<vmem>>, %arg1: memref<8x4xf32, #tpu.memory_space<vmem>>, %arg2: memref<8x1xf32, #tpu.memory_space<vmem>>, %arg3: memref<8x128xf32, #tpu.memory_space<vmem>>) attributes {dimension_semantics = [], scalar_prefetch = 0 : i64, scratch_operands = 0 : i64, tpu.core_type = #tpu.core_type<tc>} {
    %c0 = arith.constant 0 : index
    %c0_0 = arith.constant 0 : index
    %0 = vector.load %arg1[%c0, %c0_0] : memref<8x4xf32, #tpu.memory_space<vmem>>, vector<8x4xf32>
    %c0_1 = arith.constant 0 : index
    %c0_2 = arith.constant 0 : index
    %1 = vector.load %arg0[%c0_1, %c0_2] : memref<4x128xf32, #tpu.memory_space<vmem>>, vector<4x128xf32>
    %cst = arith.constant dense<0.000000e+00> : vector<8x128xf32>
    %2 = tpu.matmul %0, %1, %cst {dimension_numbers = #tpu.dot_dimension_numbers<[1], [0], [0], [1], [0, 0, 1, 1], [], []>} : vector<8x4xf32>, vector<4x128xf32>, vector<8x128xf32> -> vector<8x128xf32>
    %c0_3 = arith.constant 0 : index
    %c0_4 = arith.constant 0 : index
    %3 = vector.load %arg2[%c0_3, %c0_4] : memref<8x1xf32, #tpu.memory_space<vmem>>, vector<8x1xf32>
    %4 = vector.broadcast %3 : vector<8x1xf32> to vector<8x128xf32>
    %5 = arith.addf %2, %4 : vector<8x128xf32>
    %c0_5 = arith.constant 0 : index
    %c0_6 = arith.constant 0 : index
    %6 = vector.load %arg3[%c0_5, %c0_6] : memref<8x128xf32, #tpu.memory_space<vmem>>, vector<8x128xf32>
    tpu.vector_store %arg3[%c0_5, %c0_6], %5 {strides = array<i32>} : memref<8x128xf32, #tpu.memory_space<vmem>>, vector<8x128xf32>,
    return
  }
}

module attributes {stable_mosaic.version = 11 : i64} {
  func.func @_conv_bn_relu_kernel(%arg0: memref<36x512xf32, #tpu.memory_space<vmem>>, %arg1: memref<4x36xf32, #tpu.memory_space<vmem>>, %arg2: memref<4x1xf32, #tpu.memory_space<vmem>>, %arg3: memref<4x1xf32, #tpu.memory_space<vmem>>, %arg4: memref<4x1xf32, #tpu.memory_space<vmem>>, %arg5: memref<4x512xf32, #tpu.memory_space<vmem>>) attributes {dimension_semantics = [], scalar_prefetch = 0 : i64, scratch_operands = 0 : i64, tpu.core_type = #tpu.core_type<tc>} {
    %c0 = arith.constant 0 : index
    %c0_0 = arith.constant 0 : index
    %0 = vector.load %arg1[%c0, %c0_0] : memref<4x36xf32, #tpu.memory_space<vmem>>, vector<4x36xf32>
    %c0_1 = arith.constant 0 : index
    %c0_2 = arith.constant 0 : index
    %1 = vector.load %arg0[%c0_1, %c0_2] : memref<36x512xf32, #tpu.memory_space<vmem>>, vector<36x512xf32>
    %cst = arith.constant dense<0.000000e+00> : vector<4x512xf32>
    %2 = tpu.matmul %0, %1, %cst {dimension_numbers = #tpu.dot_dimension_numbers<[1], [0], [0], [1], [0, 0, 1, 1], [], []>} : vector<4x36xf32>, vector<36x512xf32>, vector<4x512xf32> -> vector<4x512xf32>
    %c0_3 = arith.constant 0 : index
    %c0_4 = arith.constant 0 : index
    %3 = vector.load %arg2[%c0_3, %c0_4] : memref<4x1xf32, #tpu.memory_space<vmem>>, vector<4x1xf32>
    %4 = vector.broadcast %3 : vector<4x1xf32> to vector<4x512xf32>
    %5 = arith.addf %2, %4 : vector<4x512xf32>
    %cst_5 = arith.constant dense<0.000000e+00> : vector<4xf32>
    %6 = vector.multi_reduction <add>, %5, %cst_5 [1] : vector<4x512xf32> to vector<4xf32>
    %7 = vector.shape_cast %6 : vector<4xf32> to vector<4x1xf32>
    %cst_6 = arith.constant 0.001953125 : f32
    %8 = vector.broadcast %cst_6 : f32 to vector<4x1xf32>
    %9 = arith.mulf %7, %8 : vector<4x1xf32>
    %10 = vector.broadcast %9 : vector<4x1xf32> to vector<4x512xf32>
    %11 = arith.subf %5, %10 : vector<4x512xf32>
    %12 = arith.mulf %11, %11 : vector<4x512xf32>
    %cst_7 = arith.constant dense<0.000000e+00> : vector<4xf32>
    %13 = vector.multi_reduction <add>, %12, %cst_7 [1] : vector<4x512xf32> to vector<4xf32>
    %14 = vector.shape_cast %13 : vector<4xf32> to vector<4x1xf32>
    %cst_8 = arith.constant 0.001953125 : f32
    %15 = vector.broadcast %cst_8 : f32 to vector<4x1xf32>
    %16 = arith.mulf %14, %15 : vector<4x1xf32>
    %c0_9 = arith.constant 0 : index
    %c0_10 = arith.constant 0 : index
    %17 = vector.load %arg3[%c0_9, %c0_10] : memref<4x1xf32, #tpu.memory_space<vmem>>, vector<4x1xf32>
    %18 = vector.broadcast %17 : vector<4x1xf32> to vector<4x512xf32>
    %19 = arith.mulf %18, %11 : vector<4x512xf32>
    %cst_11 = arith.constant 9.99999974E-6 : f32
    %20 = vector.broadcast %cst_11 : f32 to vector<4x1xf32>
    %21 = arith.addf %16, %20 : vector<4x1xf32>
    %22 = math.rsqrt %21 : vector<4x1xf32>
    %23 = vector.broadcast %22 : vector<4x1xf32> to vector<4x512xf32>
    %24 = arith.mulf %19, %23 : vector<4x512xf32>
    %c0_12 = arith.constant 0 : index
    %c0_13 = arith.constant 0 : index
    %25 = vector.load %arg4[%c0_12, %c0_13] : memref<4x1xf32, #tpu.memory_space<vmem>>, vector<4x1xf32>
    %26 = vector.broadcast %25 : vector<4x1xf32> to vector<4x512xf32>
    %27 = arith.addf %24, %26 : vector<4x512xf32>
    %cst_14 = arith.constant 0.000000e+00 : f32
    %28 = vector.broadcast %cst_14 : f32 to vector<4x512xf32>
    %29 = arith.maximumf %27, %28 : vector<4x512xf32>
    %c0_15 = arith.constant 0 : index
    %c0_16 = arith.constant 0 : index
    %30 = vector.load %arg5[%c0_15, %c0_16] : memref<4x512xf32, #tpu.memory_space<vmem>>, vector<4x512xf32>
    tpu.vector_store %arg5[%c0_15, %c0_16], %29 {strides = array<i32>} : memref<4x512xf32, #tpu.memory_space<vmem>>, vector<4x512xf32>,
    return
  }
}

</mosaic_0001>

<llo_original>
// kernel: up_forward.3
$region0: #{up_forward.3}
  #allocation0 [shape = 'u32[]', space=smem, size = 0x4, offset = 0x4, fixed_abs, tag = 'smem constant byte address 0x4 - core index']
  #allocation1 [shape = 'u32[72,128]{1,0:T(1,128)}', space=vmem, size = 0x9000, scoped, tag = 'internal scratch']
  %s0 = inlined_call_operand.vmem [shape: f32[4,128], index: 0, kind: input, shape index: {}]
  %s1 = inlined_call_operand.vmem [shape: f32[8,4], index: 1, kind: input, shape index: {}]
  %s2 = inlined_call_operand.vmem [shape: f32[8,1], index: 2, kind: input, shape index: {}]
  %s3 = inlined_call_operand.vmem [shape: f32[8,128], index: 3, kind: output, shape index: {}]
  %s4 = sld [smem:[#allocation0]]
  $region22: #{up_forward.3} parent=0
    _
  %s6 = ssub.s32 1, %s4
  %s7 = scalar_select 0, %s6, %s4
  // Predicated region
  $region2: #{up_forward.3} parent=0 // pred_check
    _
  $region3: #{up_forward.3} parent=0 // pred_check_branch
    %9 = sbr.rel (0) target = $region5
  $region4: #{up_forward.3} parent=0 // pred_region
    _
  $region5: #{up_forward.3} parent=0 // pred_fallthru
    _
  // Predicated region
  $region6: #{up_forward.3} parent=0 // pred_check
    _
  $region7: #{up_forward.3} parent=0 // pred_check_branch
    %11 = sbr.rel (0) target = $region9
  $region8: #{up_forward.3} parent=0 // pred_region
    _
  $region9: #{up_forward.3} parent=0 // pred_fallthru
    _
  // Predicated region
  $region10: #{up_forward.3} parent=0 // pred_check
    _
  $region11: #{up_forward.3} parent=0 // pred_check_branch
    %13 = sbr.rel (0) target = $region13
  $region12: #{up_forward.3} parent=0 // pred_region
    _
  $region13: #{up_forward.3} parent=0 // pred_fallthru
    _
  %v14 = vld [vmem:[%s1] sm:$0xff]
  %v15 = vld [vmem:[%s0] sm:$0xf]
  %v16 = vld [vmem:[%s2] sm:$0xff]
  %18 = vset.pattern.permute.xlu0 0
  %19 = vperm.xlu0 %18, %v16
  %v20 = vpop.permute.xlu0 %19
  %vm22 = vcmask 31744
  %v24 = vsel %vm22, %v14, 0
  %vm26 = vcmask 1043456
  %v28 = vsel %vm26, %v15, 0
  %30 = vmatpush.msra.mxu0 0.0
  %31 = vmatpush.msra.mxu0 0.0
  %32 = vmatpush.msra.mxu0 0.0
  %33 = vmatpush.msra.mxu0 0.0
  %34 = vmatpush.msra.mxu0 0.0
  %35 = vmatpush.msra.mxu0 0.0
  %36 = vmatpush.msra.mxu0 0.0
  %37 = vmatpush.msra.mxu0 0.0
  %38 = vmatpush.msra.mxu0 0.0
  %39 = vmatpush.msra.mxu0 0.0
  %40 = vmatpush.msra.mxu0 0.0
  %41 = vmatpush.msra.mxu0 0.0
  %42 = vmatpush.msra.mxu0 0.0
  %43 = vmatpush.msra.mxu0 0.0
  %44 = vmatpush.msra.mxu0 0.0
  %45 = vmatpush.msra.mxu0 %v28
  %46 = vmatmul.f32.gmra.mxu0 %v24
  %v47 = vpop.f32.mrf.mxu0
  %v48 = vadd.f32 %v20, %v47
  %49 = vdwg.mxu0
  %50 = vst [vmem:[%s3] sm:$0xff] %v48
  // Predicated region
  $region14: #{up_forward.3} parent=0 // pred_check
    _
  $region15: #{up_forward.3} parent=0 // pred_check_branch
    %52 = sbr.rel (0) target = $region17
  $region16: #{up_forward.3} parent=0 // pred_region
    _
  $region17: #{up_forward.3} parent=0 // pred_fallthru
    _
  // Predicated region
  $region18: #{up_forward.3} parent=0 // pred_check
    _
  $region19: #{up_forward.3} parent=0 // pred_check_branch
    %54 = sbr.rel (0) target = $region21
  $region20: #{up_forward.3} parent=0 // pred_region
    _
  $region21: #{up_forward.3} parent=0 // pred_fallthru
    _

// kernel: up_forward.4
$region0: #{up_forward.4}
  #allocation0 [shape = 'u32[]', space=smem, size = 0x4, offset = 0x4, fixed_abs, tag = 'smem constant byte address 0x4 - core index']
  #allocation1 [shape = 'u32[72,128]{1,0:T(1,128)}', space=vmem, size = 0x9000, scoped, tag = 'internal scratch']
  %s0 = inlined_call_operand.vmem [shape: f32[36,512], index: 0, kind: input, shape index: {}]
  %s1 = inlined_call_operand.vmem [shape: f32[4,36], index: 1, kind: input, shape index: {}]
  %s2 = inlined_call_operand.vmem [shape: f32[4,1], index: 2, kind: input, shape index: {}]
  %s3 = inlined_call_operand.vmem [shape: f32[4,1], index: 3, kind: input, shape index: {}]
  %s4 = inlined_call_operand.vmem [shape: f32[4,1], index: 4, kind: input, shape index: {}]
  %s5 = inlined_call_operand.vmem [shape: f32[4,512], index: 5, kind: output, shape index: {}]
  %s6 = sld [smem:[#allocation0]]
  $region30: #{up_forward.4} parent=0
    _
  %s8 = ssub.s32 1, %s6
  %s9 = scalar_select 0, %s8, %s6
  // Predicated region
  $region2: #{up_forward.4} parent=0 // pred_check
    _
  $region3: #{up_forward.4} parent=0 // pred_check_branch
    %11 = sbr.rel (0) target = $region5
  $region4: #{up_forward.4} parent=0 // pred_region
    _
  $region5: #{up_forward.4} parent=0 // pred_fallthru
    _
  // Predicated region
  $region6: #{up_forward.4} parent=0 // pred_check
    _
  $region7: #{up_forward.4} parent=0 // pred_check_branch
    %13 = sbr.rel (0) target = $region9
  $region8: #{up_forward.4} parent=0 // pred_region
    _
  $region9: #{up_forward.4} parent=0 // pred_fallthru
    _
  // Predicated region
  $region10: #{up_forward.4} parent=0 // pred_check
    _
  $region11: #{up_forward.4} parent=0 // pred_check_branch
    %15 = sbr.rel (0) target = $region13
  $region12: #{up_forward.4} parent=0 // pred_region
    _
  $region13: #{up_forward.4} parent=0 // pred_fallthru
    _
  // Predicated region
  $region14: #{up_forward.4} parent=0 // pred_check
    _
  $region15: #{up_forward.4} parent=0 // pred_check_branch
    %17 = sbr.rel (0) target = $region17
  $region16: #{up_forward.4} parent=0 // pred_region
    _
  $region17: #{up_forward.4} parent=0 // pred_fallthru
    _
  // Predicated region
  $region18: #{up_forward.4} parent=0 // pred_check
    _
  $region19: #{up_forward.4} parent=0 // pred_check_branch
    %19 = sbr.rel (0) target = $region21
  $region20: #{up_forward.4} parent=0 // pred_region
    _
  $region21: #{up_forward.4} parent=0 // pred_fallthru
    _
  %v20 = vld [vmem:[%s1] sm:$0xf]
  %v21 = vld [vmem:[%s0] sm:$0xff]
  %v22 = vld [vmem:[%s0 + $0x8] sm:$0xff]
  %v23 = vld [vmem:[%s0 + $0x10] sm:$0xff]
  %v24 = vld [vmem:[%s0 + $0x18] sm:$0xff]
  %v25 = vld [vmem:[%s0 + $0x20] sm:$0xff]
  %v26 = vld [vmem:[%s0 + $0x28] sm:$0xff]
  %v27 = vld [vmem:[%s0 + $0x30] sm:$0xff]
  %v28 = vld [vmem:[%s0 + $0x38] sm:$0xff]
  %v29 = vld [vmem:[%s0 + $0x40] sm:$0xff]
  %v30 = vld [vmem:[%s0 + $0x48] sm:$0xff]
  %v31 = vld [vmem:[%s0 + $0x50] sm:$0xff]
  %v32 = vld [vmem:[%s0 + $0x58] sm:$0xff]
  %v33 = vld [vmem:[%s0 + $0x60] sm:$0xff]
  %v34 = vld [vmem:[%s0 + $0x68] sm:$0xff]
  %v35 = vld [vmem:[%s0 + $0x70] sm:$0xff]
  %v36 = vld [vmem:[%s0 + $0x78] sm:$0xff]
  %v37 = vld [vmem:[%s0 + $0x80] sm:$0xf]
  %v38 = vld [vmem:[%s0 + $0x88] sm:$0xf]
  %v39 = vld [vmem:[%s0 + $0x90] sm:$0xf]
  %v40 = vld [vmem:[%s0 + $0x98] sm:$0xf]
  %v41 = vld [vmem:[%s2] sm:$0xf]
  %43 = vset.pattern.permute.xlu0 0
  %44 = vperm.xlu0 %43, %v41
  %v45 = vpop.permute.xlu0 %44
  %vm47 = vcmask 293888
  %v49 = vsel %vm47, %v20, 0
  %vm51 = vcmask 1043456
  %v53 = vsel %vm51, %v37, 0
  %v56 = vsel %vm51, %v38, 0
  %v59 = vsel %vm51, %v39, 0
  %v62 = vsel %vm51, %v40, 0
  %64 = vmatpush.msra.mxu0 0.0
  %65 = vmatpush.msra.mxu0 0.0
  %66 = vmatpush.msra.mxu0 0.0
  %67 = vmatpush.msra.mxu0 0.0
  %68 = vmatpush.msra.mxu0 0.0
  %69 = vmatpush.msra.mxu0 0.0
  %70 = vmatpush.msra.mxu0 0.0
  %71 = vmatpush.msra.mxu0 0.0
  %72 = vmatpush.msra.mxu0 0.0
  %73 = vmatpush.msra.mxu0 0.0
  %74 = vmatpush.msra.mxu0 0.0
  %75 = vmatpush.msra.mxu0 %v53
  %76 = vmatpush.msra.mxu0 %v33
  %77 = vmatpush.msra.mxu0 %v29
  %78 = vmatpush.msra.mxu0 %v25
  %79 = vmatpush.msra.mxu0 %v21
  %80 = vmatmul.f32.gmra.mxu0 %v49
  %v81 = vpop.f32.mrf.mxu0
  %v82 = vadd.f32 %v45, %v81
  %83 = vdwg.mxu0
  %84 = vmatpush.msra.mxu0 0.0
  %85 = vmatpush.msra.mxu0 0.0
  %86 = vmatpush.msra.mxu0 0.0
  %87 = vmatpush.msra.mxu0 0.0
  %88 = vmatpush.msra.mxu0 0.0
  %89 = vmatpush.msra.mxu0 0.0
  %90 = vmatpush.msra.mxu0 0.0
  %91 = vmatpush.msra.mxu0 0.0
  %92 = vmatpush.msra.mxu0 0.0
  %93 = vmatpush.msra.mxu0 0.0
  %94 = vmatpush.msra.mxu0 0.0
  %95 = vmatpush.msra.mxu0 %v56
  %96 = vmatpush.msra.mxu0 %v34
  %97 = vmatpush.msra.mxu0 %v30
  %98 = vmatpush.msra.mxu0 %v26
  %99 = vmatpush.msra.mxu0 %v22
  %100 = vmatmul.f32.gmra.mxu0 %v49
  %v101 = vpop.f32.mrf.mxu0
  %v102 = vadd.f32 %v45, %v101
  %103 = vdwg.mxu0
  %104 = vmatpush.msra.mxu0 0.0
  %105 = vmatpush.msra.mxu0 0.0
  %106 = vmatpush.msra.mxu0 0.0
  %107 = vmatpush.msra.mxu0 0.0
  %108 = vmatpush.msra.mxu0 0.0
  %109 = vmatpush.msra.mxu0 0.0
  %110 = vmatpush.msra.mxu0 0.0
  %111 = vmatpush.msra.mxu0 0.0
  %112 = vmatpush.msra.mxu0 0.0
  %113 = vmatpush.msra.mxu0 0.0
  %114 = vmatpush.msra.mxu0 0.0
  %115 = vmatpush.msra.mxu0 %v59
  %116 = vmatpush.msra.mxu0 %v35
  %117 = vmatpush.msra.mxu0 %v31
  %118 = vmatpush.msra.mxu0 %v27
  %119 = vmatpush.msra.mxu0 %v23
  %120 = vmatmul.f32.gmra.mxu0 %v49
  %v121 = vpop.f32.mrf.mxu0
  %v122 = vadd.f32 %v45, %v121
  %123 = vdwg.mxu0
  %124 = vmatpush.msra.mxu0 0.0
  %125 = vmatpush.msra.mxu0 0.0
  %126 = vmatpush.msra.mxu0 0.0
  %127 = vmatpush.msra.mxu0 0.0
  %128 = vmatpush.msra.mxu0 0.0
  %129 = vmatpush.msra.mxu0 0.0
  %130 = vmatpush.msra.mxu0 0.0
  %131 = vmatpush.msra.mxu0 0.0
  %132 = vmatpush.msra.mxu0 0.0
  %133 = vmatpush.msra.mxu0 0.0
  %134 = vmatpush.msra.mxu0 0.0
  %135 = vmatpush.msra.mxu0 %v62
  %136 = vmatpush.msra.mxu0 %v36
  %137 = vmatpush.msra.mxu0 %v32
  %138 = vmatpush.msra.mxu0 %v28
  %139 = vmatpush.msra.mxu0 %v24
  %140 = vmatmul.f32.gmra.mxu0 %v49
  %v141 = vpop.f32.mrf.mxu0
  %v142 = vadd.f32 %v45, %v141
  %143 = vdwg.mxu0
  %v144 = vsel %vm51, %v82, 0.0
  %v145 = vsel %vm51, %v102, 0.0
  %v146 = vadd.f32 %v144, %v145
  %v147 = vsel %vm51, %v122, 0.0
  %v148 = vadd.f32 %v146, %v147
  %v149 = vsel %vm51, %v142, 0.0
  %v150 = vadd.f32 %v148, %v149
  %151 = vadd.xlane.f32.xlu0 %v150
  %v152 = vpop.xlane.xlu0 %151
  %v153 = vmul.f32 %v152, 0.001953125
  %v154 = vsub.f32 %v82, %v153
  %v155 = vsub.f32 %v102, %v153
  %v156 = vsub.f32 %v122, %v153
  %v157 = vsub.f32 %v142, %v153
  %v158 = vmul.f32 %v154, %v154
  %v159 = vmul.f32 %v155, %v155
  %v160 = vmul.f32 %v156, %v156
  %v161 = vmul.f32 %v157, %v157
  %v162 = vsel %vm51, %v158, 0.0
  %v163 = vsel %vm51, %v159, 0.0
  %v164 = vadd.f32 %v162, %v163
  %v165 = vsel %vm51, %v160, 0.0
  %v166 = vadd.f32 %v164, %v165
  %v167 = vsel %vm51, %v161, 0.0
  %v168 = vadd.f32 %v166, %v167
  %169 = vadd.xlane.f32.xlu0 %v168
  %v170 = vpop.xlane.xlu0 %169
  %v171 = vmul.f32 %v170, 0.001953125
  %v172 = vld [vmem:[%s3] sm:$0xf]
  %174 = vset.pattern.permute.xlu0 0
  %175 = vperm.xlu0 %174, %v172
  %v176 = vpop.permute.xlu0 %175
  %v178 = vmul.f32 %v176, %v154
  %v179 = vmul.f32 %v176, %v155
  %v180 = vmul.f32 %v176, %v156
  %v181 = vmul.f32 %v176, %v157
  %v182 = vadd.f32 %v171, 1e-05
  %v183 = vrsqrt.pop %v182
  %v184 = vmul.f32 %v183, %v182
  %v185 = vmul.f32 %v184, %v183
  %v186 = vmul.f32 0.5, %v185
  %v187 = vsub.f32 1.5, %v186
  %v188 = vmul.f32 %v183, %v187
  %vm189 = vweird.f32 %v182
  %vm190 = vweird.f32 %v183
  %vm191 = vmor %vm189, %vm190
  %v192 = vsel %vm191, %v183, %v188
  %v193 = vmul.f32 %v178, %v192
  %v194 = vmul.f32 %v179, %v192
  %v195 = vmul.f32 %v180, %v192
  %v196 = vmul.f32 %v181, %v192
  %v197 = vld [vmem:[%s4] sm:$0xf]
  %199 = vset.pattern.permute.xlu0 0
  %200 = vperm.xlu0 %199, %v197
  %v201 = vpop.permute.xlu0 %200
  %v203 = vadd.f32 %v193, %v201
  %v204 = vadd.f32 %v194, %v201
  %v205 = vadd.f32 %v195, %v201
  %v206 = vadd.f32 %v196, %v201
  %v207 = vmax.f32 %v203, 0.0
  %v208 = vmax.f32 %v204, 0.0
  %v209 = vmax.f32 %v205, 0.0
  %v210 = vmax.f32 %v206, 0.0
  %v215 = vrot.slane %v208, 4
  %v216 = vrot.slane %v210, 4
  %v217 = vsel %vm51, %v207, %v215
  %v218 = vsel %vm51, %v209, %v216
  %221 = vst [vmem:[%s5] sm:$0xff] %v217
  %222 = vst [vmem:[%s5 + $0x8] sm:$0xff] %v218
  // Predicated region
  $region22: #{up_forward.4} parent=0 // pred_check
    _
  $region23: #{up_forward.4} parent=0 // pred_check_branch
    %224 = sbr.rel (0) target = $region25
  $region24: #{up_forward.4} parent=0 // pred_region
    _
  $region25: #{up_forward.4} parent=0 // pred_fallthru
    _
  // Predicated region
  $region26: #{up_forward.4} parent=0 // pred_check
    _
  $region27: #{up_forward.4} parent=0 // pred_check_branch
    %226 = sbr.rel (0) target = $region29
  $region28: #{up_forward.4} parent=0 // pred_region
    _
  $region29: #{up_forward.4} parent=0 // pred_fallthru
    _

</llo_original>
